<compile_context>
chip_gen: v6e
topology: v6e:2x2x1
jax: 0.10.0
libtpu: 0.0.40
codegen_flags: <defaults>
</compile_context>

<pallas_src>
import math
import numpy as np
import jax
import jax.numpy as jnp
from jax.experimental import pallas as pl
from jax.experimental.pallas import tpu as pltpu

WINDOW_SIZE = 11
SIGMA = 1.5
C1 = 0.01 ** 2
C2 = 0.03 ** 2


def _gaussian_1d(window_size, sigma):
    # matches losses.gaussian(): normalized 1D Gaussian, float32
    g = np.array(
        [math.exp(-((x - window_size // 2) ** 2) / float(2 * sigma ** 2))
         for x in range(window_size)],
        dtype=np.float64,
    )
    g = g / g.sum()
    return g.astype(np.float32)


def _banded_same_conv_matrix(n, g1d):
    """M (n, n) such that (x @ M)[:, j] == sum_k g[k] * x_zpad[:, j + k - pad],
    i.e. a 1D "same" cross-correlation with implicit zero padding (matches
    F.conv2d(padding=window//2))."""
    win = len(g1d)
    pad = win // 2
    m = np.zeros((n, n), dtype=np.float32)
    for j in range(n):
        for k in range(win):
            i = j + k - pad
            if 0 <= i < n:
                m[i, j] = float(g1d[k])
    return m


def _block_diag(m, reps):
    n = m.shape[0]
    out = np.zeros((n * reps, n * reps), dtype=np.float32)
    for r in range(reps):
        out[r * n:(r + 1) * n, r * n:(r + 1) * n] = m
    return out


def _chip_lane_target():
    """Return (lane_packing_target, two_tensorcores_per_chip)."""
    try:
        kind = jax.devices()[0].device_kind.lower()
    except Exception:
        return 128, False
    if "v7" in kind:
        return 256, True        # 2x256 MXU, 2 TCs/chip
    if "v6" in kind:
        return 256, False       # 2x256 MXU, 1 TC/chip
    return 128, False           # v5e and older: 128-wide MXU is the natural width


def _make_ssim_kernel(H):
    def kernel(gh_ref, gv_ref, mask_ref, x_ref, o_ref):
        x = x_ref[...].astype(jnp.float32)        # (2H, LPW) lane-packed slab
        a = x[0:H]
        b = x[H:2 * H]

        # Stack the 5 depthwise-conv inputs along sublanes; products in f32,
        # only the matmul operands are cast to bf16 (f32 accumulation).
        s = jnp.concatenate([a, b, a * a, b * b, a * b], axis=0)   # (5H, LPW) f32

        # Horizontal "same" Gaussian conv: one block-diagonal banded bf16
        # matmul on the MXU (per-W lane segment).
        sh = jnp.dot(s.astype(jnp.bfloat16), gh_ref[...],
                     preferred_element_type=jnp.float32)           # (5H, LPW) f32

        # Vertical pass: single (H, H) filter applied to each stacked slab
        # (5x fewer MACs than the old (5H, 5H) block-diagonal matmul).
        gv = gv_ref[...]                                           # (H, H) bf16

        def vconv(i):
            return jnp.dot(gv, sh[i * H:(i + 1) * H].astype(jnp.bfloat16),
                           preferred_element_type=jnp.float32)

        mu1, mu2, e11, e22, e12 = [vconv(i) for i in range(5)]

        mu1_sq = mu1 * mu1
        mu2_sq = mu2 * mu2
        mu1_mu2 = mu1 * mu2
        sigma1_sq = e11 - mu1_sq
        sigma2_sq = e22 - mu2_sq
        sigma12 = e12 - mu1_mu2

        num = (2.0 * mu1_mu2 + C1) * (2.0 * sigma12 + C2)
        den = (mu1_sq + mu2_sq + C1) * (sigma1_sq + sigma2_sq + C2)
        # Divide -> EUP reciprocal (otherwise-idle slot).
        ssim_map = num * pl.reciprocal(den, approx=True)

        # Zero out lanes belonging to batch-padding slices (exact; removes the
        # old "padded SSIM == 1.0" assumption entirely).
        ssim_map = ssim_map * mask_ref[...]

        # Sublane-first partial reduce, then the lane reduce; per-group partial
        # output keeps the grid axis safely "parallel".
        col = jnp.sum(ssim_map, axis=0, keepdims=True)             # (1, LPW)
        o_ref[...] = jnp.sum(col, axis=1, keepdims=True)           # (1, 1)

    return kernel


def ssim_pallas(img1, img2, window_size=WINDOW_SIZE, size_average=True):
    # TODO(synk): size_average=False (per-image mean over C,H,W) not implemented.
    assert size_average, "only size_average=True is implemented"
    assert img1.shape == img2.shape
    N, C, H, W = img1.shape
    B = N * C
    g1d = _gaussian_1d(window_size, SIGMA)

    # Lane-pack LP (n, c) slices side by side; 256-lane target on v6e/v7x.
    lane_target, two_tc = _chip_lane_target()
    LP = 1 if W >= lane_target else max(1, lane_target // W)
    LP = min(LP, B)
    if two_tc and B >= 2:
        # Keep >= 2 grid steps so the "parallel" axis feeds both TensorCores.
        LP = min(LP, -(-B // 2))
    G = -(-B // LP)                      # cdiv
    pad_b = G * LP - B                   # zero slices added to fill last group
    LPW = LP * W

    def prep(x):
        x = x.reshape(B, H, W)           # keep source dtype (no HBM f32 copy)
        if pad_b:
            x = jnp.concatenate([x, jnp.zeros((pad_b, H, W), x.dtype)], axis=0)
        return x.reshape(G, LP, H, W)

    # Pack img1 and img2 into ONE slab per group -> one data DMA per grid step.
    # TODO(synk): for very large inputs avoid this host-side repack (keep the
    # producer in the packed (G, 2H, LP*W) layout upstream).
    x = jnp.concatenate([prep(img1), prep(img2)], axis=2)          # (G, LP, 2H, W)
    x = x.transpose(0, 2, 1, 3).reshape(G, 2 * H, LPW)             # (G, 2H, LPW)

    # Banded filter matrices baked at trace time; bf16 MXU operands.
    gh = jnp.asarray(_block_diag(_banded_same_conv_matrix(W, g1d), LP),
                     dtype=jnp.bfloat16)                           # (LPW, LPW)
    gv = jnp.asarray(_banded_same_conv_matrix(H, g1d).T,
                     dtype=jnp.bfloat16)                           # (H, H)

    # Lane-validity mask: 0.0 for batch-padding slices (only in the last group).
    valid = np.zeros((G * LP,), np.float32)
    valid[:B] = 1.0
    mask = jnp.asarray(
        np.repeat(valid.reshape(G, LP), W, axis=1).reshape(G, 1, LPW))

    kernel = _make_ssim_kernel(H)

    # TODO(synk): H/W tiling for very large images (v7x 64 MiB VMEM) not needed
    # at these sizes; the whole (2H, LP*W) slab is one block per grid step.
    part = pl.pallas_call(
        kernel,
        out_shape=jax.ShapeDtypeStruct((G, 1, 1), jnp.float32),
        grid_spec=pltpu.PrefetchScalarGridSpec(
            num_scalar_prefetch=0,
            grid=(G,),
            in_specs=[
                pl.BlockSpec((LPW, LPW), lambda g: (0, 0)),        # gh (const)
                pl.BlockSpec((H, H), lambda g: (0, 0)),            # gv (const)
                pl.BlockSpec((None, 1, LPW), lambda g: (g, 0, 0)),  # lane mask
                pl.BlockSpec((None, 2 * H, LPW), lambda g: (g, 0, 0)),  # data
            ],
            out_specs=pl.BlockSpec((None, 1, 1), lambda g: (g, 0, 0)),
        ),
        compiler_params=pltpu.CompilerParams(
            dimension_semantics=("parallel",)),
    )(gh, gv, mask, x)

    return jnp.sum(part) / float(N * C * H * W)


def ssim_reference(img1, img2, window_size=WINDOW_SIZE):
    # pure-JAX reference mirroring the PyTorch code (depthwise conv2d, f32).
    N, C, H, W = img1.shape
    g = jnp.asarray(_gaussian_1d(window_size, SIGMA))
    w2d = jnp.outer(g, g)
    window = jnp.broadcast_to(w2d[None, None], (C, 1, window_size, window_size))

    def conv(x):
        return jax.lax.conv_general_dilated(
            x, window, window_strides=(1, 1), padding="SAME",
            dimension_numbers=("NCHW", "OIHW", "NCHW"),
            feature_group_count=C)

    mu1, mu2 = conv(img1), conv(img2)
    mu1_sq, mu2_sq, mu1_mu2 = mu1 * mu1, mu2 * mu2, mu1 * mu2
    s1 = conv(img1 * img1) - mu1_sq
    s2 = conv(img2 * img2) - mu2_sq
    s12 = conv(img1 * img2) - mu1_mu2
    ssim_map = ((2 * mu1_mu2 + C1) * (2 * s12 + C2)) / (
        (mu1_sq + mu2_sq + C1) * (s1 + s2 + C2))
    return jnp.mean(ssim_map)


if __name__ == "__main__":
    key = jax.random.PRNGKey(0)
    k1, k2 = jax.random.split(key)
    N, C, H, W = 2, 4, 16, 16
    img1 = jax.random.uniform(k1, (N, C, H, W), dtype=jnp.float32)
    img2 = jax.random.uniform(k2, (N, C, H, W), dtype=jnp.float32)

    out = ssim_pallas(img1, img2)
    jax.block_until_ready(out)

    ref = ssim_reference(img1, img2)
    # Tolerance accounts for bf16 MXU operands (f32 accumulation) and the
    # approximate EUP reciprocal; a wrong kernel would be off by O(0.1-1).
    np.testing.assert_allclose(np.asarray(out), np.asarray(ref),
                               rtol=1e-2, atol=3e-3)
    print("KERNEL_OK")
</pallas_src>

<mosaic_0001>
module attributes {stable_mosaic.version = 11 : i64} {
  func.func @kernel(%arg0: i32, %arg1: memref<128x128xbf16, #tpu.memory_space<vmem>>, %arg2: memref<16x16xbf16, #tpu.memory_space<vmem>>, %arg3: memref<1x1x128xf32, #tpu.memory_space<vmem>>, %arg4: memref<1x32x128xf32, #tpu.memory_space<vmem>>, %arg5: memref<1x1x1xf32, #tpu.memory_space<vmem>>) attributes {dimension_semantics = [#tpu.dimension_semantics<parallel>], iteration_bounds = array<i64: 1>, scalar_prefetch = 0 : i64, scratch_operands = 0 : i64, tpu.core_type = #tpu.core_type<tc>, window_params = [{pipeline_mode = #tpu.pipeline_mode<synchronous>, transform_indices = @transform_0, window_bounds = array<i64: 128, 128>}, {pipeline_mode = #tpu.pipeline_mode<synchronous>, transform_indices = @transform_1, window_bounds = array<i64: 16, 16>}, {transform_indices = @transform_2, window_bounds = array<i64: 1, 1, 128>}, {transform_indices = @transform_3, window_bounds = array<i64: 1, 32, 128>}, {transform_indices = @transform_4, window_bounds = array<i64: 1, 1, 1>}]} {
    %c0 = arith.constant 0 : index
    %c0_0 = arith.constant 0 : index
    %c0_1 = arith.constant 0 : index
    %0 = vector.load %arg4[%c0, %c0_0, %c0_1] : memref<1x32x128xf32, #tpu.memory_space<vmem>>, vector<1x32x128xf32>
    %1 = vector.shape_cast %0 : vector<1x32x128xf32> to vector<32x128xf32>
    %2 = vector.extract_strided_slice %1 {offsets = [0, 0], sizes = [16, 128], strides = [1, 1]} : vector<32x128xf32> to vector<16x128xf32>
    %3 = vector.extract_strided_slice %1 {offsets = [16, 0], sizes = [16, 128], strides = [1, 1]} : vector<32x128xf32> to vector<16x128xf32>
    %4 = arith.mulf %2, %2 : vector<16x128xf32>
    %5 = arith.mulf %3, %3 : vector<16x128xf32>
    %6 = arith.mulf %2, %3 : vector<16x128xf32>
    %7 = tpu.concatenate %2, %3, %4, %5, %6 in 0 : vector<16x128xf32>, vector<16x128xf32>, vector<16x128xf32>, vector<16x128xf32>, vector<16x128xf32> -> vector<80x128xf32>
    %8 = arith.truncf %7 : vector<80x128xf32> to vector<80x128xbf16>
    %c0_2 = arith.constant 0 : index
    %c0_3 = arith.constant 0 : index
    %9 = vector.load %arg1[%c0_2, %c0_3] : memref<128x128xbf16, #tpu.memory_space<vmem>>, vector<128x128xbf16>
    %cst = arith.constant dense<0.000000e+00> : vector<80x128xf32>
    %10 = tpu.matmul %8, %9, %cst {dimension_numbers = #tpu.dot_dimension_numbers<[1], [0], [0], [1], [0, 0, 1, 1], [], []>} : vector<80x128xbf16>, vector<128x128xbf16>, vector<80x128xf32> -> vector<80x128xf32>
    %c0_4 = arith.constant 0 : index
    %c0_5 = arith.constant 0 : index
    %11 = vector.load %arg2[%c0_4, %c0_5] : memref<16x16xbf16, #tpu.memory_space<vmem>>, vector<16x16xbf16>
    %12 = vector.extract_strided_slice %10 {offsets = [0, 0], sizes = [16, 128], strides = [1, 1]} : vector<80x128xf32> to vector<16x128xf32>
    %13 = arith.truncf %12 : vector<16x128xf32> to vector<16x128xbf16>
    %cst_6 = arith.constant dense<0.000000e+00> : vector<16x128xf32>
    %14 = tpu.matmul %11, %13, %cst_6 {dimension_numbers = #tpu.dot_dimension_numbers<[1], [0], [0], [1], [0, 0, 1, 1], [], []>} : vector<16x16xbf16>, vector<16x128xbf16>, vector<16x128xf32> -> vector<16x128xf32>
    %15 = vector.extract_strided_slice %10 {offsets = [16, 0], sizes = [16, 128], strides = [1, 1]} : vector<80x128xf32> to vector<16x128xf32>
    %16 = arith.truncf %15 : vector<16x128xf32> to vector<16x128xbf16>
    %cst_7 = arith.constant dense<0.000000e+00> : vector<16x128xf32>
    %17 = tpu.matmul %11, %16, %cst_7 {dimension_numbers = #tpu.dot_dimension_numbers<[1], [0], [0], [1], [0, 0, 1, 1], [], []>} : vector<16x16xbf16>, vector<16x128xbf16>, vector<16x128xf32> -> vector<16x128xf32>
    %18 = vector.extract_strided_slice %10 {offsets = [32, 0], sizes = [16, 128], strides = [1, 1]} : vector<80x128xf32> to vector<16x128xf32>
    %19 = arith.truncf %18 : vector<16x128xf32> to vector<16x128xbf16>
    %cst_8 = arith.constant dense<0.000000e+00> : vector<16x128xf32>
    %20 = tpu.matmul %11, %19, %cst_8 {dimension_numbers = #tpu.dot_dimension_numbers<[1], [0], [0], [1], [0, 0, 1, 1], [], []>} : vector<16x16xbf16>, vector<16x128xbf16>, vector<16x128xf32> -> vector<16x128xf32>
    %21 = vector.extract_strided_slice %10 {offsets = [48, 0], sizes = [16, 128], strides = [1, 1]} : vector<80x128xf32> to vector<16x128xf32>
    %22 = arith.truncf %21 : vector<16x128xf32> to vector<16x128xbf16>
    %cst_9 = arith.constant dense<0.000000e+00> : vector<16x128xf32>
    %23 = tpu.matmul %11, %22, %cst_9 {dimension_numbers = #tpu.dot_dimension_numbers<[1], [0], [0], [1], [0, 0, 1, 1], [], []>} : vector<16x16xbf16>, vector<16x128xbf16>, vector<16x128xf32> -> vector<16x128xf32>
    %24 = vector.extract_strided_slice %10 {offsets = [64, 0], sizes = [16, 128], strides = [1, 1]} : vector<80x128xf32> to vector<16x128xf32>
    %25 = arith.truncf %24 : vector<16x128xf32> to vector<16x128xbf16>
    %cst_10 = arith.constant dense<0.000000e+00> : vector<16x128xf32>
    %26 = tpu.matmul %11, %25, %cst_10 {dimension_numbers = #tpu.dot_dimension_numbers<[1], [0], [0], [1], [0, 0, 1, 1], [], []>} : vector<16x16xbf16>, vector<16x128xbf16>, vector<16x128xf32> -> vector<16x128xf32>
    %27 = arith.mulf %14, %14 : vector<16x128xf32>
    %28 = arith.mulf %17, %17 : vector<16x128xf32>
    %29 = arith.mulf %14, %17 : vector<16x128xf32>
    %30 = arith.subf %20, %27 : vector<16x128xf32>
    %31 = arith.subf %23, %28 : vector<16x128xf32>
    %32 = arith.subf %26, %29 : vector<16x128xf32>
    %cst_11 = arith.constant 2.000000e+00 : f32
    %33 = vector.broadcast %cst_11 : f32 to vector<16x128xf32>
    %34 = arith.mulf %33, %29 : vector<16x128xf32>
    %cst_12 = arith.constant 9.99999974E-5 : f32
    %35 = vector.broadcast %cst_12 : f32 to vector<16x128xf32>
    %36 = arith.addf %34, %35 : vector<16x128xf32>
    %cst_13 = arith.constant 2.000000e+00 : f32
    %37 = vector.broadcast %cst_13 : f32 to vector<16x128xf32>
    %38 = arith.mulf %37, %32 : vector<16x128xf32>
    %cst_14 = arith.constant 8.99999984E-4 : f32
    %39 = vector.broadcast %cst_14 : f32 to vector<16x128xf32>
    %40 = arith.addf %38, %39 : vector<16x128xf32>
    %41 = arith.mulf %36, %40 : vector<16x128xf32>
    %42 = arith.addf %27, %28 : vector<16x128xf32>
    %cst_15 = arith.constant 9.99999974E-5 : f32
    %43 = vector.broadcast %cst_15 : f32 to vector<16x128xf32>
    %44 = arith.addf %42, %43 : vector<16x128xf32>
    %45 = arith.addf %30, %31 : vector<16x128xf32>
    %cst_16 = arith.constant 8.99999984E-4 : f32
    %46 = vector.broadcast %cst_16 : f32 to vector<16x128xf32>
    %47 = arith.addf %45, %46 : vector<16x128xf32>
    %48 = arith.mulf %44, %47 : vector<16x128xf32>
    %49 = tpu.reciprocal %48 {approx = true} : vector<16x128xf32> -> vector<16x128xf32>
    %50 = arith.mulf %41, %49 : vector<16x128xf32>
    %c0_17 = arith.constant 0 : index
    %c0_18 = arith.constant 0 : index
    %c0_19 = arith.constant 0 : index
    %51 = vector.load %arg3[%c0_17, %c0_18, %c0_19] : memref<1x1x128xf32, #tpu.memory_space<vmem>>, vector<1x1x128xf32>
    %52 = vector.shape_cast %51 : vector<1x1x128xf32> to vector<1x128xf32>
    %53 = vector.broadcast %52 : vector<1x128xf32> to vector<16x128xf32>
    %54 = arith.mulf %50, %53 : vector<16x128xf32>
    %cst_20 = arith.constant dense<0.000000e+00> : vector<128xf32>
    %55 = vector.multi_reduction <add>, %54, %cst_20 [0] : vector<16x128xf32> to vector<128xf32>
    %56 = vector.shape_cast %55 : vector<128xf32> to vector<1x128xf32>
    %cst_21 = arith.constant dense<0.000000e+00> : vector<1xf32>
    %57 = vector.multi_reduction <add>, %56, %cst_21 [1] : vector<1x128xf32> to vector<1xf32>
    %58 = vector.shape_cast %57 : vector<1xf32> to vector<1x1xf32>
    %c0_22 = arith.constant 0 : index
    %c0_23 = arith.constant 0 : index
    %c0_24 = arith.constant 0 : index
    %59 = vector.load %arg5[%c0_22, %c0_23, %c0_24] : memref<1x1x1xf32, #tpu.memory_space<vmem>>, vector<1x1x1xf32>
    %60 = vector.shape_cast %59 : vector<1x1x1xf32> to vector<1x1xf32>
    %61 = vector.shape_cast %58 : vector<1x1xf32> to vector<1x1x1xf32>
    tpu.vector_store %arg5[%c0_22, %c0_23, %c0_24], %61 {strides = array<i32>} : memref<1x1x1xf32, #tpu.memory_space<vmem>>, vector<1x1x1xf32>,
    return
  }
  func.func @transform_0(%arg0: i32) -> (i32, i32) {
    %c0_i32 = arith.constant 0 : i32
    %c0_i32_0 = arith.constant 0 : i32
    %c0_i32_1 = arith.constant 0 : i32
    return %c0_i32, %c0_i32_0 : i32, i32
  }
  func.func @transform_1(%arg0: i32) -> (i32, i32) {
    %c0_i32 = arith.constant 0 : i32
    %c0_i32_0 = arith.constant 0 : i32
    %c0_i32_1 = arith.constant 0 : i32
    return %c0_i32, %c0_i32_0 : i32, i32
  }
  func.func @transform_2(%arg0: i32) -> (i32, i32, i32) {
    %c0_i32 = arith.constant 0 : i32
    %c0_i32_0 = arith.constant 0 : i32
    %c0_i32_1 = arith.constant 0 : i32
    return %arg0, %c0_i32, %c0_i32_0 : i32, i32, i32
  }
  func.func @transform_3(%arg0: i32) -> (i32, i32, i32) {
    %c0_i32 = arith.constant 0 : i32
    %c0_i32_0 = arith.constant 0 : i32
    %c0_i32_1 = arith.constant 0 : i32
    return %arg0, %c0_i32, %c0_i32_0 : i32, i32, i32
  }
  func.func @transform_4(%arg0: i32) -> (i32, i32, i32) {
    %c0_i32 = arith.constant 0 : i32
    %c0_i32_0 = arith.constant 0 : i32
    %c0_i32_1 = arith.constant 0 : i32
    return %arg0, %c0_i32, %c0_i32_0 : i32, i32, i32
  }
}

</mosaic_0001>

<llo_original>
// kernel: tpu_custom_call.1
$region0: #{tpu_custom_call.1}
  #allocation0 [shape = 'u32[]', space=smem, size = 0x4, offset = 0x4, fixed_abs, tag = 'smem constant byte address 0x4 - core index']
  #allocation1 [shape = 'u32[144,128]{1,0:T(1,128)}', space=vmem, size = 0x12000, scoped, tag = 'internal scratch']
  %s0 = inlined_call_operand.hbm [shape: bf16[128,128], index: 0, kind: input, shape index: {}]
  %s1 = inlined_call_operand.hbm [shape: bf16[16,16], index: 1, kind: input, shape index: {}]
  %s2 = inlined_call_operand.vmem [shape: f32[1,1,128], index: 2, kind: input, shape index: {}]
  %s3 = inlined_call_operand.hbm [shape: f32[1,32,128], index: 3, kind: input, shape index: {}]
  %s4 = inlined_call_operand.hbm [shape: f32[1,1,1], index: 4, kind: output, shape index: {}]
  %s5 = sld [smem:[#allocation0]]
  $region38: #{tpu_custom_call.1} parent=0
    _
  %s7 = ssub.s32 1, %s5
  %s8 = scalar_select 0, %s7, %s5
  $region1: #{tpu_custom_call.1} parent=0
    #allocation2 [shape = 'u8[32768]{0}', space=vmem, size = 0x8000, scoped, tag = 'input window, operand 0, single buffered']
    #allocation3 [shape = 's32[1]{0}', space=sflag, size = 0x4, scoped, tag = 'scoped memory for tpu_custom_call.1']
    #allocation4 [shape = 's32[1]{0}', space=sflag, size = 0x4, scoped, tag = 'scoped memory for tpu_custom_call.1']
    #allocation5 [shape = 'u8[4096]{0}', space=vmem, size = 0x1000, scoped, tag = 'input window, operand 1, single buffered']
    #allocation6 [shape = 's32[1]{0}', space=sflag, size = 0x4, scoped, tag = 'scoped memory for tpu_custom_call.1']
    #allocation7 [shape = 'u8[16384]{0}', space=vmem, size = 0x4000, scoped, tag = 'input window, operand 3, single buffered']
    #allocation8 [shape = 'u8[512]{0}', space=vmem, size = 0x400, scoped, tag = 'output window, operand 0, single buffered']
    %9 = vsyncpa [#allocation3], 0
    %10 = vsyncpa [#allocation6], 0
    %11 = vsyncpa [#allocation4], 0
    // Predicated region
    $region2: #{tpu_custom_call.1} parent=1 // pred_check
      _
    $region3: #{tpu_custom_call.1} parent=1 // pred_check_branch
      %13 = sbr.rel (0) target = $region5
    $region4: #{tpu_custom_call.1} parent=1 // pred_region
      %s15 = ssub.s32 1024, 1024
      %16 = vsyncadd [#allocation3], %s15
      %s17 = sshll.u32 [#allocation2], 4
      %s18 = int_to_ptr.vmem [resolvable:$true] %s17
      %23 = dma.hbm_to_vmem [thread:$0]  %s0, 1024, %s18, [#allocation3], 64, 64, 4
    $region5: #{tpu_custom_call.1} parent=1 // pred_fallthru
      _
    // Predicated region
    $region6: #{tpu_custom_call.1} parent=1 // pred_check
      _
    $region7: #{tpu_custom_call.1} parent=1 // pred_check_branch
      %25 = sbr.rel (0) target = $region9
    $region8: #{tpu_custom_call.1} parent=1 // pred_region
      %s27 = ssub.s32 128, 128
      %28 = vsyncadd [#allocation6], %s27
      %s29 = sshll.u32 [#allocation5], 4
      %s30 = int_to_ptr.vmem [resolvable:$true] %s29
      %35 = dma.hbm_to_vmem [thread:$0]  %s1, 128, %s30, [#allocation6], 64, 64, 4
    $region9: #{tpu_custom_call.1} parent=1 // pred_fallthru
      _
    // Predicated region
    $region10: #{tpu_custom_call.1} parent=1 // pred_check
      _
    $region11: #{tpu_custom_call.1} parent=1 // pred_check_branch
      %37 = sbr.rel (0) target = $region13
    $region12: #{tpu_custom_call.1} parent=1 // pred_region
      _
    $region13: #{tpu_custom_call.1} parent=1 // pred_fallthru
      _
    // Predicated region
    $region14: #{tpu_custom_call.1} parent=1 // pred_check
      _
    $region15: #{tpu_custom_call.1} parent=1 // pred_check_branch
      %39 = sbr.rel (0) target = $region17
    $region16: #{tpu_custom_call.1} parent=1 // pred_region
      %s41 = ssub.s32 512, 512
      %42 = vsyncadd [#allocation6], %s41
      %s43 = sshll.u32 [#allocation7], 4
      %s44 = int_to_ptr.vmem [resolvable:$true] %s43
      %49 = dma.hbm_to_vmem [thread:$0]  %s3, 512, %s44, [#allocation6], 128, 128, 8
    $region17: #{tpu_custom_call.1} parent=1 // pred_fallthru
      _
    // Predicated region
    $region18: #{tpu_custom_call.1} parent=1 // pred_check
      _
    $region19: #{tpu_custom_call.1} parent=1 // pred_check_branch
      %51 = sbr.rel (0) target = $region21
    $region20: #{tpu_custom_call.1} parent=1 // pred_region
      %52 = dma.done [#allocation3], 1024
    $region21: #{tpu_custom_call.1} parent=1 // pred_fallthru
      _
    // Predicated region
    $region22: #{tpu_custom_call.1} parent=1 // pred_check
      _
    $region23: #{tpu_custom_call.1} parent=1 // pred_check_branch
      %54 = sbr.rel (0) target = $region25
    $region24: #{tpu_custom_call.1} parent=1 // pred_region
      %55 = dma.done [#allocation6], 128
    $region25: #{tpu_custom_call.1} parent=1 // pred_fallthru
      _
    // Predicated region
    $region26: #{tpu_custom_call.1} parent=1 // pred_check
      _
    $region27: #{tpu_custom_call.1} parent=1 // pred_check_branch
      %57 = sbr.rel (0) target = $region29
    $region28: #{tpu_custom_call.1} parent=1 // pred_region
      %58 = dma.done [#allocation6], 512
    $region29: #{tpu_custom_call.1} parent=1 // pred_fallthru
      _
    %v60 = vld [vmem:[#allocation7] sm:$0xff]
    %v61 = vld [vmem:[#allocation7 + $0x8] sm:$0xff]
    %v62 = vld [vmem:[#allocation7 + $0x10] sm:$0xff]
    %v63 = vld [vmem:[#allocation7 + $0x18] sm:$0xff]
    %v64 = vmul.f32 %v60, %v60
    %v65 = vmul.f32 %v61, %v61
    %v66 = vmul.f32 %v62, %v62
    %v67 = vmul.f32 %v63, %v63
    %v68 = vmul.f32 %v60, %v62
    %v69 = vmul.f32 %v61, %v63
    %v70 = vpack.c.bf16 %v61, %v60
    %v71 = vpack.c.bf16 %v63, %v62
    %v72 = vpack.c.bf16 %v65, %v64
    %v73 = vpack.c.bf16 %v67, %v66
    %v74 = vpack.c.bf16 %v69, %v68
    %v75 = vld [vmem:[#allocation2] sm:$0xf]
    %v76 = vld [vmem:[#allocation2 + $0x4] sm:$0xf]
    %v77 = vld [vmem:[#allocation2 + $0x8] sm:$0xf]
    %v78 = vld [vmem:[#allocation2 + $0xc] sm:$0xf]
    %v79 = vld [vmem:[#allocation2 + $0x10] sm:$0xf]
    %v80 = vld [vmem:[#allocation2 + $0x14] sm:$0xf]
    %v81 = vld [vmem:[#allocation2 + $0x18] sm:$0xf]
    %v82 = vld [vmem:[#allocation2 + $0x1c] sm:$0xf]
    %v83 = vld [vmem:[#allocation2 + $0x20] sm:$0xf]
    %v84 = vld [vmem:[#allocation2 + $0x24] sm:$0xf]
    %v85 = vld [vmem:[#allocation2 + $0x28] sm:$0xf]
    %v86 = vld [vmem:[#allocation2 + $0x2c] sm:$0xf]
    %v87 = vld [vmem:[#allocation2 + $0x30] sm:$0xf]
    %v88 = vld [vmem:[#allocation2 + $0x34] sm:$0xf]
    %v89 = vld [vmem:[#allocation2 + $0x38] sm:$0xf]
    %v90 = vld [vmem:[#allocation2 + $0x3c] sm:$0xf]
    %v107 = vunpack.c.l.b16 %v75
    %v108 = vunpack.c.l.b16 %v76
    %v109 = vunpack.c.l.b16 %v77
    %v110 = vunpack.c.l.b16 %v78
    %v111 = vunpack.c.l.b16 %v79
    %v112 = vunpack.c.l.b16 %v80
    %v113 = vunpack.c.l.b16 %v81
    %v114 = vunpack.c.l.b16 %v82
    %v115 = vunpack.c.l.b16 %v83
    %v116 = vunpack.c.l.b16 %v84
    %v117 = vunpack.c.l.b16 %v85
    %v118 = vunpack.c.l.b16 %v86
    %v119 = vunpack.c.l.b16 %v87
    %v120 = vunpack.c.l.b16 %v88
    %v121 = vunpack.c.l.b16 %v89
    %v122 = vunpack.c.l.b16 %v90
    %v123 = vpack.c.b16 %v108, %v107
    %v124 = vpack.c.b16 %v110, %v109
    %v125 = vpack.c.b16 %v112, %v111
    %v126 = vpack.c.b16 %v114, %v113
    %v127 = vpack.c.b16 %v116, %v115
    %v128 = vpack.c.b16 %v118, %v117
    %v129 = vpack.c.b16 %v120, %v119
    %v130 = vpack.c.b16 %v122, %v121
    %139 = vmatprep.subr.bf16.mxu0 0
    %140 = vmatpush1.bf16.msra.mxu0 %v130
    %141 = vmatprep.subr.bf16.mxu0 0
    %142 = vmatpush1.bf16.msra.mxu0 %v129
    %143 = vmatprep.subr.bf16.mxu0 0
    %144 = vmatpush1.bf16.msra.mxu0 %v128
    %145 = vmatprep.subr.bf16.mxu0 0
    %146 = vmatpush1.bf16.msra.mxu0 %v127
    %147 = vmatprep.subr.bf16.mxu0 0
    %148 = vmatpush1.bf16.msra.mxu0 %v126
    %149 = vmatprep.subr.bf16.mxu0 0
    %150 = vmatpush1.bf16.msra.mxu0 %v125
    %151 = vmatprep.subr.bf16.mxu0 0
    %152 = vmatpush1.bf16.msra.mxu0 %v124
    %153 = vmatprep.subr.bf16.mxu0 0
    %154 = vmatpush1.bf16.msra.mxu0 %v123
    %155 = vmatprep.subr.bf16.mxu0 0
    %156 = vmatpush2.bf16.msra.mxu0 0
    %157 = vmatprep.subr.bf16.mxu0 0
    %158 = vmatpush2.bf16.msra.mxu0 0
    %159 = vmatprep.subr.bf16.mxu0 0
    %160 = vmatpush2.bf16.msra.mxu0 0
    %161 = vmatprep.subr.bf16.mxu0 0
    %162 = vmatpush2.bf16.msra.mxu0 0
    %163 = vmatprep.subr.bf16.mxu0 0
    %164 = vmatpush2.bf16.msra.mxu0 0
    %165 = vmatprep.subr.bf16.mxu0 0
    %166 = vmatpush2.bf16.msra.mxu0 0
    %167 = vmatprep.subr.bf16.mxu0 0
    %168 = vmatpush2.bf16.msra.mxu0 0
    %169 = vmatprep.subr.bf16.mxu0 0
    %170 = vmatpush2.bf16.msra.mxu0 0
    %171 = vmatprep.mubr.bf16.mxu0 0
    %172 = vmatmul.mubr.bf16.gmra.mxu0 %v70
    %v173 = vpop.f32.mrf.mxu0
    %v174 = vadd.f32 0.0, %v173
    %v175 = vpop.f32.mrf.mxu0
    %v176 = vpop.f32.mrf.mxu0
    %v177 = vadd.f32 0.0, %v176
    %v178 = vpop.f32.mrf.mxu0
    %179 = vmatprep.mubr.bf16.mxu0 0
    %180 = vmatmul.mubr.bf16.gmra.mxu0 %v71
    %v181 = vpop.f32.mrf.mxu0
    %v182 = vadd.f32 0.0, %v181
    %v183 = vpop.f32.mrf.mxu0
    %v184 = vpop.f32.mrf.mxu0
    %v185 = vadd.f32 0.0, %v184
    %v186 = vpop.f32.mrf.mxu0
    %187 = vmatprep.mubr.bf16.mxu0 0
    %188 = vmatmul.mubr.bf16.gmra.mxu0 %v72
    %v189 = vpop.f32.mrf.mxu0
    %v190 = vadd.f32 0.0, %v189
    %v191 = vpop.f32.mrf.mxu0
    %v192 = vpop.f32.mrf.mxu0
    %v193 = vadd.f32 0.0, %v192
    %v194 = vpop.f32.mrf.mxu0
    %195 = vmatprep.mubr.bf16.mxu0 0
    %196 = vmatmul.mubr.bf16.gmra.mxu0 %v73
    %v197 = vpop.f32.mrf.mxu0
    %v198 = vadd.f32 0.0, %v197
    %v199 = vpop.f32.mrf.mxu0
    %v200 = vpop.f32.mrf.mxu0
    %v201 = vadd.f32 0.0, %v200
    %v202 = vpop.f32.mrf.mxu0
    %203 = vmatprep.mubr.bf16.mxu0 0
    %204 = vmatmul.mubr.bf16.gmra.mxu0 %v74
    %v205 = vpop.f32.mrf.mxu0
    %v206 = vadd.f32 0.0, %v205
    %v207 = vpop.f32.mrf.mxu0
    %v208 = vpop.f32.mrf.mxu0
    %v209 = vadd.f32 0.0, %v208
    %v210 = vpop.f32.mrf.mxu0
    %211 = vdwg.mxu0
    %v212 = vld [vmem:[#allocation5] sm:$0xf]
    %v213 = vld [vmem:[#allocation5 + $0x4] sm:$0xf]
    %v214 = vpack.c.bf16 %v177, %v174
    %v217 = vunpack.c.l.b16 %v212
    %v218 = vunpack.c.l.b16 %v213
    %v219 = vpack.c.b16 %v218, %v217
    %vm220 = vcmask 130048
    %v222 = vsel %vm220, %v219, 0
    %224 = vmatprep.subr.bf16.mxu0 0
    %225 = vmatpush1.bf16.msra.mxu0 0
    %226 = vmatprep.subr.bf16.mxu0 0
    %227 = vmatpush1.bf16.msra.mxu0 0
    %228 = vmatprep.subr.bf16.mxu0 0
    %229 = vmatpush1.bf16.msra.mxu0 0
    %230 = vmatprep.subr.bf16.mxu0 0
    %231 = vmatpush1.bf16.msra.mxu0 0
    %232 = vmatprep.subr.bf16.mxu0 0
    %233 = vmatpush1.bf16.msra.mxu0 0
    %234 = vmatprep.subr.bf16.mxu0 0
    %235 = vmatpush1.bf16.msra.mxu0 0
    %236 = vmatprep.subr.bf16.mxu0 0
    %237 = vmatpush1.bf16.msra.mxu0 0
    %238 = vmatprep.subr.bf16.mxu0 0
    %239 = vmatpush1.bf16.msra.mxu0 %v214
    %240 = vmatprep.subr.bf16.mxu0 0
    %241 = vmatpush2.bf16.msra.mxu0 0
    %242 = vmatprep.subr.bf16.mxu0 0
    %243 = vmatpush2.bf16.msra.mxu0 0
    %244 = vmatprep.subr.bf16.mxu0 0
    %245 = vmatpush2.bf16.msra.mxu0 0
    %246 = vmatprep.subr.bf16.mxu0 0
    %247 = vmatpush2.bf16.msra.mxu0 0
    %248 = vmatprep.subr.bf16.mxu0 0
    %249 = vmatpush2.bf16.msra.mxu0 0
    %250 = vmatprep.subr.bf16.mxu0 0
    %251 = vmatpush2.bf16.msra.mxu0 0
    %252 = vmatprep.subr.bf16.mxu0 0
    %253 = vmatpush2.bf16.msra.mxu0 0
    %254 = vmatprep.subr.bf16.mxu0 0
    %255 = vmatpush2.bf16.msra.mxu0 0
    %256 = vmatprep.mubr.bf16.mxu0 0
    %257 = vmatmul.mubr.bf16.gmra.mxu0 %v222
    %v258 = vpop.f32.mrf.mxu0
    %v259 = vadd.f32 0.0, %v258
    %v260 = vpop.f32.mrf.mxu0
    %v261 = vpop.f32.mrf.mxu0
    %v262 = vadd.f32 0.0, %v261
    %v263 = vpop.f32.mrf.mxu0
    %264 = vdwg.mxu0
    %v265 = vpack.c.bf16 %v185, %v182
    %266 = vmatprep.subr.bf16.mxu0 0
    %267 = vmatpush1.bf16.msra.mxu0 0
    %268 = vmatprep.subr.bf16.mxu0 0
    %269 = vmatpush1.bf16.msra.mxu0 0
    %270 = vmatprep.subr.bf16.mxu0 0
    %271 = vmatpush1.bf16.msra.mxu0 0
    %272 = vmatprep.subr.bf16.mxu0 0
    %273 = vmatpush1.bf16.msra.mxu0 0
    %274 = vmatprep.subr.bf16.mxu0 0
    %275 = vmatpush1.bf16.msra.mxu0 0
    %276 = vmatprep.subr.bf16.mxu0 0
    %277 = vmatpush1.bf16.msra.mxu0 0
    %278 = vmatprep.subr.bf16.mxu0 0
    %279 = vmatpush1.bf16.msra.mxu0 0
    %280 = vmatprep.subr.bf16.mxu0 0
    %281 = vmatpush1.bf16.msra.mxu0 %v265
    %282 = vmatprep.subr.bf16.mxu0 0
    %283 = vmatpush2.bf16.msra.mxu0 0
    %284 = vmatprep.subr.bf16.mxu0 0
    %285 = vmatpush2.bf16.msra.mxu0 0
    %286 = vmatprep.subr.bf16.mxu0 0
    %287 = vmatpush2.bf16.msra.mxu0 0
    %288 = vmatprep.subr.bf16.mxu0 0
    %289 = vmatpush2.bf16.msra.mxu0 0
    %290 = vmatprep.subr.bf16.mxu0 0
    %291 = vmatpush2.bf16.msra.mxu0 0
    %292 = vmatprep.subr.bf16.mxu0 0
    %293 = vmatpush2.bf16.msra.mxu0 0
    %294 = vmatprep.subr.bf16.mxu0 0
    %295 = vmatpush2.bf16.msra.mxu0 0
    %296 = vmatprep.subr.bf16.mxu0 0
    %297 = vmatpush2.bf16.msra.mxu0 0
    %298 = vmatprep.mubr.bf16.mxu0 0
    %299 = vmatmul.mubr.bf16.gmra.mxu0 %v222
    %v300 = vpop.f32.mrf.mxu0
    %v301 = vadd.f32 0.0, %v300
    %v302 = vpop.f32.mrf.mxu0
    %v303 = vpop.f32.mrf.mxu0
    %v304 = vadd.f32 0.0, %v303
    %v305 = vpop.f32.mrf.mxu0
    %306 = vdwg.mxu0
    %v307 = vpack.c.bf16 %v193, %v190
    %308 = vmatprep.subr.bf16.mxu0 0
    %309 = vmatpush1.bf16.msra.mxu0 0
    %310 = vmatprep.subr.bf16.mxu0 0
    %311 = vmatpush1.bf16.msra.mxu0 0
    %312 = vmatprep.subr.bf16.mxu0 0
    %313 = vmatpush1.bf16.msra.mxu0 0
    %314 = vmatprep.subr.bf16.mxu0 0
    %315 = vmatpush1.bf16.msra.mxu0 0
    %316 = vmatprep.subr.bf16.mxu0 0
    %317 = vmatpush1.bf16.msra.mxu0 0
    %318 = vmatprep.subr.bf16.mxu0 0
    %319 = vmatpush1.bf16.msra.mxu0 0
    %320 = vmatprep.subr.bf16.mxu0 0
    %321 = vmatpush1.bf16.msra.mxu0 0
    %322 = vmatprep.subr.bf16.mxu0 0
    %323 = vmatpush1.bf16.msra.mxu0 %v307
    %324 = vmatprep.subr.bf16.mxu0 0
    %325 = vmatpush2.bf16.msra.mxu0 0
    %326 = vmatprep.subr.bf16.mxu0 0
    %327 = vmatpush2.bf16.msra.mxu0 0
    %328 = vmatprep.subr.bf16.mxu0 0
    %329 = vmatpush2.bf16.msra.mxu0 0
    %330 = vmatprep.subr.bf16.mxu0 0
    %331 = vmatpush2.bf16.msra.mxu0 0
    %332 = vmatprep.subr.bf16.mxu0 0
    %333 = vmatpush2.bf16.msra.mxu0 0
    %334 = vmatprep.subr.bf16.mxu0 0
    %335 = vmatpush2.bf16.msra.mxu0 0
    %336 = vmatprep.subr.bf16.mxu0 0
    %337 = vmatpush2.bf16.msra.mxu0 0
    %338 = vmatprep.subr.bf16.mxu0 0
    %339 = vmatpush2.bf16.msra.mxu0 0
    %340 = vmatprep.mubr.bf16.mxu0 0
    %341 = vmatmul.mubr.bf16.gmra.mxu0 %v222
    %v342 = vpop.f32.mrf.mxu0
    %v343 = vadd.f32 0.0, %v342
    %v344 = vpop.f32.mrf.mxu0
    %v345 = vpop.f32.mrf.mxu0
    %v346 = vadd.f32 0.0, %v345
    %v347 = vpop.f32.mrf.mxu0
    %348 = vdwg.mxu0
    %v349 = vpack.c.bf16 %v201, %v198
    %350 = vmatprep.subr.bf16.mxu0 0
    %351 = vmatpush1.bf16.msra.mxu0 0
    %352 = vmatprep.subr.bf16.mxu0 0
    %353 = vmatpush1.bf16.msra.mxu0 0
    %354 = vmatprep.subr.bf16.mxu0 0
    %355 = vmatpush1.bf16.msra.mxu0 0
    %356 = vmatprep.subr.bf16.mxu0 0
    %357 = vmatpush1.bf16.msra.mxu0 0
    %358 = vmatprep.subr.bf16.mxu0 0
    %359 = vmatpush1.bf16.msra.mxu0 0
    %360 = vmatprep.subr.bf16.mxu0 0
    %361 = vmatpush1.bf16.msra.mxu0 0
    %362 = vmatprep.subr.bf16.mxu0 0
    %363 = vmatpush1.bf16.msra.mxu0 0
    %364 = vmatprep.subr.bf16.mxu0 0
    %365 = vmatpush1.bf16.msra.mxu0 %v349
    %366 = vmatprep.subr.bf16.mxu0 0
    %367 = vmatpush2.bf16.msra.mxu0 0
    %368 = vmatprep.subr.bf16.mxu0 0
    %369 = vmatpush2.bf16.msra.mxu0 0
    %370 = vmatprep.subr.bf16.mxu0 0
    %371 = vmatpush2.bf16.msra.mxu0 0
    %372 = vmatprep.subr.bf16.mxu0 0
    %373 = vmatpush2.bf16.msra.mxu0 0
    %374 = vmatprep.subr.bf16.mxu0 0
    %375 = vmatpush2.bf16.msra.mxu0 0
    %376 = vmatprep.subr.bf16.mxu0 0
    %377 = vmatpush2.bf16.msra.mxu0 0
    %378 = vmatprep.subr.bf16.mxu0 0
    %379 = vmatpush2.bf16.msra.mxu0 0
    %380 = vmatprep.subr.bf16.mxu0 0
    %381 = vmatpush2.bf16.msra.mxu0 0
    %382 = vmatprep.mubr.bf16.mxu0 0
    %383 = vmatmul.mubr.bf16.gmra.mxu0 %v222
    %v384 = vpop.f32.mrf.mxu0
    %v385 = vadd.f32 0.0, %v384
    %v386 = vpop.f32.mrf.mxu0
    %v387 = vpop.f32.mrf.mxu0
    %v388 = vadd.f32 0.0, %v387
    %v389 = vpop.f32.mrf.mxu0
    %390 = vdwg.mxu0
    %v391 = vpack.c.bf16 %v209, %v206
    %392 = vmatprep.subr.bf16.mxu0 0
    %393 = vmatpush1.bf16.msra.mxu0 0
    %394 = vmatprep.subr.bf16.mxu0 0
    %395 = vmatpush1.bf16.msra.mxu0 0
    %396 = vmatprep.subr.bf16.mxu0 0
    %397 = vmatpush1.bf16.msra.mxu0 0
    %398 = vmatprep.subr.bf16.mxu0 0
    %399 = vmatpush1.bf16.msra.mxu0 0
    %400 = vmatprep.subr.bf16.mxu0 0
    %401 = vmatpush1.bf16.msra.mxu0 0
    %402 = vmatprep.subr.bf16.mxu0 0
    %403 = vmatpush1.bf16.msra.mxu0 0
    %404 = vmatprep.subr.bf16.mxu0 0
    %405 = vmatpush1.bf16.msra.mxu0 0
    %406 = vmatprep.subr.bf16.mxu0 0
    %407 = vmatpush1.bf16.msra.mxu0 %v391
    %408 = vmatprep.subr.bf16.mxu0 0
    %409 = vmatpush2.bf16.msra.mxu0 0
    %410 = vmatprep.subr.bf16.mxu0 0
    %411 = vmatpush2.bf16.msra.mxu0 0
    %412 = vmatprep.subr.bf16.mxu0 0
    %413 = vmatpush2.bf16.msra.mxu0 0
    %414 = vmatprep.subr.bf16.mxu0 0
    %415 = vmatpush2.bf16.msra.mxu0 0
    %416 = vmatprep.subr.bf16.mxu0 0
    %417 = vmatpush2.bf16.msra.mxu0 0
    %418 = vmatprep.subr.bf16.mxu0 0
    %419 = vmatpush2.bf16.msra.mxu0 0
    %420 = vmatprep.subr.bf16.mxu0 0
    %421 = vmatpush2.bf16.msra.mxu0 0
    %422 = vmatprep.subr.bf16.mxu0 0
    %423 = vmatpush2.bf16.msra.mxu0 0
    %424 = vmatprep.mubr.bf16.mxu0 0
    %425 = vmatmul.mubr.bf16.gmra.mxu0 %v222
    %v426 = vpop.f32.mrf.mxu0
    %v427 = vadd.f32 0.0, %v426
    %v428 = vpop.f32.mrf.mxu0
    %v429 = vpop.f32.mrf.mxu0
    %v430 = vadd.f32 0.0, %v429
    %v431 = vpop.f32.mrf.mxu0
    %432 = vdwg.mxu0
    %v433 = vmul.f32 %v259, %v259
    %v434 = vmul.f32 %v262, %v262
    %v435 = vmul.f32 %v301, %v301
    %v436 = vmul.f32 %v304, %v304
    %v437 = vmul.f32 %v259, %v301
    %v438 = vmul.f32 %v262, %v304
    %v439 = vsub.f32 %v343, %v433
    %v440 = vsub.f32 %v346, %v434
    %v441 = vsub.f32 %v385, %v435
    %v442 = vsub.f32 %v388, %v436
    %v443 = vsub.f32 %v427, %v437
    %v444 = vsub.f32 %v430, %v438
    %v445 = vmul.f32 %v437, 2.0
    %v446 = vmul.f32 %v438, 2.0
    %v447 = vadd.f32 %v445, 0.0001
    %v448 = vadd.f32 %v446, 0.0001
    %v449 = vmul.f32 %v443, 2.0
    %v450 = vmul.f32 %v444, 2.0
    %v451 = vadd.f32 %v449, 0.0009
    %v452 = vadd.f32 %v450, 0.0009
    %v453 = vmul.f32 %v447, %v451
    %v454 = vmul.f32 %v448, %v452
    %v455 = vadd.f32 %v433, %v435
    %v456 = vadd.f32 %v434, %v436
    %v457 = vadd.f32 %v455, 0.0001
    %v458 = vadd.f32 %v456, 0.0001
    %v459 = vadd.f32 %v439, %v441
    %v460 = vadd.f32 %v440, %v442
    %v461 = vadd.f32 %v459, 0.0009
    %v462 = vadd.f32 %v460, 0.0009
    %v463 = vmul.f32 %v457, %v461
    %v464 = vmul.f32 %v458, %v462
    %v465 = vrcp.pop %v463
    %v466 = vrcp.pop %v464
    %v467 = vmul.f32 %v453, %v465
    %v468 = vmul.f32 %v454, %v466
    %v469 = vld [vmem:[%s2] sm:$0x1]
    %v471 = vlaneseq
    %v472 = vshrl.u32 %v471, 7
    %v473 = vsub.s32 0, %v472
    %v474 = vrot.slane %v469, %v473
    %v476 = vmul.f32 %v467, %v474
    %v477 = vmul.f32 %v468, %v474
    %v478 = vadd.f32 %v476, %v477
    %v479 = vrot.slane %v478, 4
    %v480 = vadd.f32 %v478, %v479
    %v481 = vrot.slane %v480, 2
    %v482 = vadd.f32 %v480, %v481
    %v483 = vrot.slane %v482, 1
    %v484 = vadd.f32 %v482, %v483
    %485 = vadd.xlane.f32.xlu0 %v484
    %v486 = vpop.xlane.xlu0 %485
    %vm487 = vcmask 0
    %488 = vst.msk [vmem:[#allocation8] sm:$0x1] %vm487, %v486
    // Predicated region
    $region30: #{tpu_custom_call.1} parent=1 // pred_check
      _
    $region31: #{tpu_custom_call.1} parent=1 // pred_check_branch
      %490 = sbr.rel (0) target = $region33
    $region32: #{tpu_custom_call.1} parent=1 // pred_region
      %s492 = ssub.s32 16, 16
      %493 = vsyncadd [#allocation4], %s492
      %s495 = sshll.u32 [#allocation8], 4
      %s496 = int_to_ptr.vmem [resolvable:$true] %s495
      %498 = dma.vmem_to_hbm [thread:$0]  %s496, 16, %s4, [#allocation4]
    $region33: #{tpu_custom_call.1} parent=1 // pred_fallthru
      _
    // Predicated region
    $region34: #{tpu_custom_call.1} parent=1 // pred_check
      _
    $region35: #{tpu_custom_call.1} parent=1 // pred_check_branch
      %500 = sbr.rel (0) target = $region37
    $region36: #{tpu_custom_call.1} parent=1 // pred_region
      %501 = dma.done [#allocation4], 16
    $region37: #{tpu_custom_call.1} parent=1 // pred_fallthru
      _
    %502 = vsyncpa [#allocation3], 1
    %503 = vsyncpa [#allocation6], 1
    %504 = vsyncpa [#allocation4], 1

</llo_original>
